<compile_context>
chip_gen: v6e
topology: v6e:2x2x1
jax: 0.10.0
libtpu: 0.0.40
codegen_flags: <defaults>
</compile_context>

<pallas_src>
import functools

import jax
import jax.numpy as jnp
from jax.experimental import pallas as pl
from jax.experimental.pallas import tpu as pltpu
import numpy as np


def _l_spa_kernel(ph_ref, pw_ref, su_ref, sd_ref, sl_ref, sr_ref,
                  org_ref, enh_ref, out_ref, *, bt, c):
    # ph/pw/su/sd/sl/sr: resident constant blocks (constant index_map).
    # org_ref / enh_ref: (bt, c, h, w) VMEM blocks; out_ref: (bt, 1, hp, wp).
    f32 = jnp.float32
    inv_c = f32(1.0 / c)

    ph = ph_ref[...]   # (hp, h)   4x4 row-pool (left matmul)
    pw = pw_ref[...]   # (w, wp)   4x4 col-pool (right matmul)
    su = su_ref[...]   # (hp, hp)  (SU @ x)[i, :] = x[i-1, :]  (zero top row)
    sd = sd_ref[...]   # (hp, hp)  (SD @ x)[i, :] = x[i+1, :]  (zero bottom row)
    sl = sl_ref[...]   # (wp, wp)  (x @ SL)[:, j] = x[:, j-1]  (zero left col)
    sr = sr_ref[...]   # (wp, wp)  (x @ SR)[:, j] = x[:, j+1]  (zero right col)

    def one_image(b):
        # Channel mean of the difference, vectorized over the channel axis.
        d_mean = (org_ref[b] - enh_ref[b]).sum(axis=0) * inv_c        # (h, w)

        # 4x4 average pool via two MXU matmuls.
        t = jnp.dot(ph, d_mean, preferred_element_type=f32)           # (hp, w)
        p = jnp.dot(t, pw, preferred_element_type=f32)                # (hp, wp)

        # Directional differences (== fixed 3x3 convs with padding=1).
        d_left = p - jnp.dot(p, sl, preferred_element_type=f32)
        d_right = p - jnp.dot(p, sr, preferred_element_type=f32)
        d_up = p - jnp.dot(su, p, preferred_element_type=f32)
        d_down = p - jnp.dot(sd, p, preferred_element_type=f32)

        out_ref[b, 0] = (d_left * d_left + d_right * d_right +
                         d_up * d_up + d_down * d_down)

    if bt <= 8:
        # Short static unroll: gives the LLO scheduler full visibility.
        for b in range(bt):
            one_image(b)
    else:
        # Large blocks (small images): keep codegen compact with a real loop.
        def body(b, carry):
            one_image(b)
            return carry

        jax.lax.fori_loop(0, bt, body, 0)


def _round_up(x, m):
    return -(-x // m) * m


def _padded_bytes(rows, cols):
    # f32 VMEM footprint of a 2-D tile after (8, 128) sublane/lane padding.
    return _round_up(rows, 8) * _round_up(cols, 128) * 4


def _choose_block_batch(b, c, h, w, *, vmem_budget_bytes=24 << 20,
                        dma_target_bytes=4 << 20, min_grid_steps=4):
    """Pick the per-step batch block size bt (a divisor of b).

    bt is the largest divisor of b that:
      * keeps the (8,128)-padded, double-buffered input/output blocks plus
        resident constants and in-kernel temporaries under vmem_budget_bytes,
      * does not exceed what is needed to move ~dma_target_bytes of HBM
        traffic per grid step (the kernel is HBM-bound; multi-MiB steps are
        already near the roofline, bigger only costs grid parallelism),
      * leaves >= min_grid_steps grid steps when b allows it (>=2 for tiny
        batches), so v7x megacore can split the batch axis and the
        double-buffered pipeline reaches steady state.
    """
    hp, wp = max(h // 4, 1), max(w // 4, 1)

    # Double-buffered org + enh input blocks plus the output block, per image.
    vmem_per_image = 2 * 2 * c * _padded_bytes(h, w) + 2 * _padded_bytes(hp, wp)
    # Resident constants (double-buffered) + largest temporaries + margin.
    const_bytes = 2 * (_padded_bytes(hp, h) + _padded_bytes(w, wp)
                       + 2 * _padded_bytes(hp, hp) + 2 * _padded_bytes(wp, wp))
    temp_bytes = 2 * _padded_bytes(h, w) + 2 * _padded_bytes(hp, w)
    vmem_fixed = const_bytes + temp_bytes + (1 << 20)
    bt_vmem = max(1, (vmem_budget_bytes - vmem_fixed) // vmem_per_image)

    # Actual HBM bytes moved per image per step (org + enh, f32).
    dma_per_image = 2 * c * h * w * 4
    bt_dma = max(1, -(-dma_target_bytes // dma_per_image))

    cap = min(b, bt_vmem, bt_dma)
    steps = min(min_grid_steps, b) if b > 1 else 1
    cap = max(1, min(cap, b // steps))

    # Largest divisor of b not exceeding the cap.
    # TODO(synk): for prime b this degrades to bt=1; a cdiv grid with a masked
    # final block would avoid that perf cliff.
    bt = 1
    for d in range(1, int(cap) + 1):
        if b % d == 0:
            bt = d
    return bt


def l_spa_pallas(org, enhance, *, block_batch=None,
                 vmem_budget_bytes=24 << 20, vmem_limit_bytes=32 << 20):
    b, c, h, w = org.shape
    assert enhance.shape == org.shape
    assert h % 4 == 0 and w % 4 == 0, "AvgPool2d(4) assumes spatial divisible by 4"
    hp, wp = h // 4, w // 4
    f32 = jnp.float32

    org = org.astype(f32)
    enhance = enhance.astype(f32)

    bt = (block_batch if block_batch is not None
          else _choose_block_batch(b, c, h, w, vmem_budget_bytes=vmem_budget_bytes))
    assert b % bt == 0
    grid = (b // bt,)

    # Host-built constants (DMA'd once thanks to constant index_maps).
    ph = (0.25 * np.kron(np.eye(hp, dtype=np.float32),
                         np.ones((1, 4), np.float32))).astype(np.float32)   # (hp, h)
    pw = (0.25 * np.kron(np.eye(wp, dtype=np.float32),
                         np.ones((4, 1), np.float32))).astype(np.float32)   # (w, wp)
    su = np.eye(hp, k=-1, dtype=np.float32)
    sd = np.eye(hp, k=1, dtype=np.float32)
    sl = np.eye(wp, k=1, dtype=np.float32)
    sr = np.eye(wp, k=-1, dtype=np.float32)

    const_specs = [
        pl.BlockSpec(ph.shape, lambda i: (0, 0)),
        pl.BlockSpec(pw.shape, lambda i: (0, 0)),
        pl.BlockSpec(su.shape, lambda i: (0, 0)),
        pl.BlockSpec(sd.shape, lambda i: (0, 0)),
        pl.BlockSpec(sl.shape, lambda i: (0, 0)),
        pl.BlockSpec(sr.shape, lambda i: (0, 0)),
    ]

    kernel = functools.partial(_l_spa_kernel, bt=bt, c=c)

    return pl.pallas_call(
        kernel,
        out_shape=jax.ShapeDtypeStruct((b, 1, hp, wp), f32),
        grid=grid,
        in_specs=const_specs + [
            pl.BlockSpec((bt, c, h, w), lambda i: (i, 0, 0, 0)),
            pl.BlockSpec((bt, c, h, w), lambda i: (i, 0, 0, 0)),
        ],
        out_specs=pl.BlockSpec((bt, 1, hp, wp), lambda i: (i, 0, 0, 0)),
        compiler_params=pltpu.CompilerParams(
            dimension_semantics=("parallel",),
            vmem_limit_bytes=vmem_limit_bytes),
    )(jnp.asarray(ph), jnp.asarray(pw), jnp.asarray(su), jnp.asarray(sd),
      jnp.asarray(sl), jnp.asarray(sr), org, enhance)


def l_spa_reference(org, enhance):
    # Pure-JAX reference mirroring the PyTorch forward.
    om = jnp.mean(org, axis=1, keepdims=True)
    em = jnp.mean(enhance, axis=1, keepdims=True)

    def pool(x):
        bb, cc, hh, ww = x.shape
        return x.reshape(bb, cc, hh // 4, 4, ww // 4, 4).mean(axis=(3, 5))

    op, ep = pool(om), pool(em)

    def dirs(x):
        p = jnp.pad(x, ((0, 0), (0, 0), (1, 1), (1, 1)))
        left = x - p[:, :, 1:-1, :-2]
        right = x - p[:, :, 1:-1, 2:]
        up = x - p[:, :, :-2, 1:-1]
        down = x - p[:, :, 2:, 1:-1]
        return left, right, up, down

    ol, orr, ou, od = dirs(op)
    el, er, eu, ed = dirs(ep)
    return (ol - el) ** 2 + (orr - er) ** 2 + (ou - eu) ** 2 + (od - ed) ** 2


if __name__ == "__main__":
    key = jax.random.PRNGKey(0)

    # Primary small test (shapes implied by the module).
    k1, k2, k3, k4 = jax.random.split(key, 4)
    B, C, H, W = 2, 4, 16, 16
    org = jax.random.uniform(k1, (B, C, H, W), dtype=jnp.float32)
    enhance = jax.random.uniform(k2, (B, C, H, W), dtype=jnp.float32)

    out = jax.block_until_ready(l_spa_pallas(org, enhance))
    ref = jax.block_until_ready(l_spa_reference(org, enhance))
    assert out.shape == (B, 1, H // 4, W // 4)
    np.testing.assert_allclose(np.asarray(out), np.asarray(ref), rtol=1e-5, atol=1e-5)

    # Secondary test exercising the batch-blocked path (bt > 1, grid >= 4).
    B2, C2, H2, W2 = 8, 3, 32, 32
    org2 = jax.random.uniform(k3, (B2, C2, H2, W2), dtype=jnp.float32)
    enh2 = jax.random.uniform(k4, (B2, C2, H2, W2), dtype=jnp.float32)
    out2 = jax.block_until_ready(l_spa_pallas(org2, enh2))
    ref2 = jax.block_until_ready(l_spa_reference(org2, enh2))
    np.testing.assert_allclose(np.asarray(out2), np.asarray(ref2), rtol=1e-5, atol=1e-5)

    print("KERNEL_OK")
</pallas_src>

<mosaic_0001>
module attributes {stable_mosaic.version = 11 : i64} {
  func.func @_l_spa_kernel(%arg0: i32, %arg1: memref<4x16xf32, #tpu.memory_space<vmem>>, %arg2: memref<16x4xf32, #tpu.memory_space<vmem>>, %arg3: memref<4x4xf32, #tpu.memory_space<vmem>>, %arg4: memref<4x4xf32, #tpu.memory_space<vmem>>, %arg5: memref<4x4xf32, #tpu.memory_space<vmem>>, %arg6: memref<4x4xf32, #tpu.memory_space<vmem>>, %arg7: memref<1x4x16x16xf32, #tpu.memory_space<vmem>>, %arg8: memref<1x4x16x16xf32, #tpu.memory_space<vmem>>, %arg9: memref<1x1x4x4xf32, #tpu.memory_space<vmem>>) attributes {dimension_semantics = [#tpu.dimension_semantics<parallel>], iteration_bounds = array<i64: 2>, scalar_prefetch = 0 : i64, scratch_operands = 0 : i64, tpu.core_type = #tpu.core_type<tc>, window_params = [{pipeline_mode = #tpu.pipeline_mode<synchronous>, transform_indices = @transform_0, window_bounds = array<i64: 4, 16>}, {pipeline_mode = #tpu.pipeline_mode<synchronous>, transform_indices = @transform_1, window_bounds = array<i64: 16, 4>}, {pipeline_mode = #tpu.pipeline_mode<synchronous>, transform_indices = @transform_2, window_bounds = array<i64: 4, 4>}, {pipeline_mode = #tpu.pipeline_mode<synchronous>, transform_indices = @transform_3, window_bounds = array<i64: 4, 4>}, {pipeline_mode = #tpu.pipeline_mode<synchronous>, transform_indices = @transform_4, window_bounds = array<i64: 4, 4>}, {pipeline_mode = #tpu.pipeline_mode<synchronous>, transform_indices = @transform_5, window_bounds = array<i64: 4, 4>}, {transform_indices = @transform_6, window_bounds = array<i64: 1, 4, 16, 16>}, {transform_indices = @transform_7, window_bounds = array<i64: 1, 4, 16, 16>}, {transform_indices = @transform_8, window_bounds = array<i64: 1, 1, 4, 4>}]} {
    %c0 = arith.constant 0 : index
    %c0_0 = arith.constant 0 : index
    %0 = vector.load %arg1[%c0, %c0_0] : memref<4x16xf32, #tpu.memory_space<vmem>>, vector<4x16xf32>
    %c0_1 = arith.constant 0 : index
    %c0_2 = arith.constant 0 : index
    %1 = vector.load %arg2[%c0_1, %c0_2] : memref<16x4xf32, #tpu.memory_space<vmem>>, vector<16x4xf32>
    %c0_3 = arith.constant 0 : index
    %c0_4 = arith.constant 0 : index
    %2 = vector.load %arg3[%c0_3, %c0_4] : memref<4x4xf32, #tpu.memory_space<vmem>>, vector<4x4xf32>
    %c0_5 = arith.constant 0 : index
    %c0_6 = arith.constant 0 : index
    %3 = vector.load %arg4[%c0_5, %c0_6] : memref<4x4xf32, #tpu.memory_space<vmem>>, vector<4x4xf32>
    %c0_7 = arith.constant 0 : index
    %c0_8 = arith.constant 0 : index
    %4 = vector.load %arg5[%c0_7, %c0_8] : memref<4x4xf32, #tpu.memory_space<vmem>>, vector<4x4xf32>
    %c0_9 = arith.constant 0 : index
    %c0_10 = arith.constant 0 : index
    %5 = vector.load %arg6[%c0_9, %c0_10] : memref<4x4xf32, #tpu.memory_space<vmem>>, vector<4x4xf32>
    %c0_11 = arith.constant 0 : index
    %c0_12 = arith.constant 0 : index
    %c0_13 = arith.constant 0 : index
    %c0_14 = arith.constant 0 : index
    %6 = vector.load %arg7[%c0_11, %c0_12, %c0_13, %c0_14] : memref<1x4x16x16xf32, #tpu.memory_space<vmem>>, vector<1x4x16x16xf32>
    %7 = vector.shape_cast %6 : vector<1x4x16x16xf32> to vector<4x16x16xf32>
    %c0_15 = arith.constant 0 : index
    %c0_16 = arith.constant 0 : index
    %c0_17 = arith.constant 0 : index
    %c0_18 = arith.constant 0 : index
    %8 = vector.load %arg8[%c0_15, %c0_16, %c0_17, %c0_18] : memref<1x4x16x16xf32, #tpu.memory_space<vmem>>, vector<1x4x16x16xf32>
    %9 = vector.shape_cast %8 : vector<1x4x16x16xf32> to vector<4x16x16xf32>
    %10 = arith.subf %7, %9 : vector<4x16x16xf32>
    %cst = arith.constant dense<0.000000e+00> : vector<16x16xf32>
    %11 = vector.multi_reduction <add>, %10, %cst [0] : vector<4x16x16xf32> to vector<16x16xf32>
    %cst_19 = arith.constant 2.500000e-01 : f32
    %12 = vector.broadcast %cst_19 : f32 to vector<16x16xf32>
    %13 = arith.mulf %11, %12 : vector<16x16xf32>
    %cst_20 = arith.constant dense<0.000000e+00> : vector<4x16xf32>
    %14 = tpu.matmul %0, %13, %cst_20 {dimension_numbers = #tpu.dot_dimension_numbers<[1], [0], [0], [1], [0, 0, 1, 1], [], []>} : vector<4x16xf32>, vector<16x16xf32>, vector<4x16xf32> -> vector<4x16xf32>
    %cst_21 = arith.constant dense<0.000000e+00> : vector<4x4xf32>
    %15 = tpu.matmul %14, %1, %cst_21 {dimension_numbers = #tpu.dot_dimension_numbers<[1], [0], [0], [1], [0, 0, 1, 1], [], []>} : vector<4x16xf32>, vector<16x4xf32>, vector<4x4xf32> -> vector<4x4xf32>
    %cst_22 = arith.constant dense<0.000000e+00> : vector<4x4xf32>
    %16 = tpu.matmul %15, %4, %cst_22 {dimension_numbers = #tpu.dot_dimension_numbers<[1], [0], [0], [1], [0, 0, 1, 1], [], []>} : vector<4x4xf32>, vector<4x4xf32>, vector<4x4xf32> -> vector<4x4xf32>
    %17 = arith.subf %15, %16 : vector<4x4xf32>
    %cst_23 = arith.constant dense<0.000000e+00> : vector<4x4xf32>
    %18 = tpu.matmul %15, %5, %cst_23 {dimension_numbers = #tpu.dot_dimension_numbers<[1], [0], [0], [1], [0, 0, 1, 1], [], []>} : vector<4x4xf32>, vector<4x4xf32>, vector<4x4xf32> -> vector<4x4xf32>
    %19 = arith.subf %15, %18 : vector<4x4xf32>
    %cst_24 = arith.constant dense<0.000000e+00> : vector<4x4xf32>
    %20 = tpu.matmul %2, %15, %cst_24 {dimension_numbers = #tpu.dot_dimension_numbers<[1], [0], [0], [1], [0, 0, 1, 1], [], []>} : vector<4x4xf32>, vector<4x4xf32>, vector<4x4xf32> -> vector<4x4xf32>
    %21 = arith.subf %15, %20 : vector<4x4xf32>
    %cst_25 = arith.constant dense<0.000000e+00> : vector<4x4xf32>
    %22 = tpu.matmul %3, %15, %cst_25 {dimension_numbers = #tpu.dot_dimension_numbers<[1], [0], [0], [1], [0, 0, 1, 1], [], []>} : vector<4x4xf32>, vector<4x4xf32>, vector<4x4xf32> -> vector<4x4xf32>
    %23 = arith.subf %15, %22 : vector<4x4xf32>
    %24 = arith.mulf %17, %17 : vector<4x4xf32>
    %25 = arith.mulf %19, %19 : vector<4x4xf32>
    %26 = arith.addf %24, %25 : vector<4x4xf32>
    %27 = arith.mulf %21, %21 : vector<4x4xf32>
    %28 = arith.addf %26, %27 : vector<4x4xf32>
    %29 = arith.mulf %23, %23 : vector<4x4xf32>
    %30 = arith.addf %28, %29 : vector<4x4xf32>
    %c0_26 = arith.constant 0 : index
    %c0_27 = arith.constant 0 : index
    %c0_28 = arith.constant 0 : index
    %c0_29 = arith.constant 0 : index
    %31 = vector.load %arg9[%c0_26, %c0_27, %c0_28, %c0_29] : memref<1x1x4x4xf32, #tpu.memory_space<vmem>>, vector<1x1x4x4xf32>
    %32 = vector.shape_cast %31 : vector<1x1x4x4xf32> to vector<4x4xf32>
    %33 = vector.shape_cast %30 : vector<4x4xf32> to vector<1x1x4x4xf32>
    tpu.vector_store %arg9[%c0_26, %c0_27, %c0_28, %c0_29], %33 {strides = array<i32>} : memref<1x1x4x4xf32, #tpu.memory_space<vmem>>, vector<1x1x4x4xf32>,
    return
  }
  func.func @transform_0(%arg0: i32) -> (i32, i32) {
    %c0_i32 = arith.constant 0 : i32
    %c0_i32_0 = arith.constant 0 : i32
    %c0_i32_1 = arith.constant 0 : i32
    return %c0_i32, %c0_i32_0 : i32, i32
  }
  func.func @transform_1(%arg0: i32) -> (i32, i32) {
    %c0_i32 = arith.constant 0 : i32
    %c0_i32_0 = arith.constant 0 : i32
    %c0_i32_1 = arith.constant 0 : i32
    return %c0_i32, %c0_i32_0 : i32, i32
  }
  func.func @transform_2(%arg0: i32) -> (i32, i32) {
    %c0_i32 = arith.constant 0 : i32
    %c0_i32_0 = arith.constant 0 : i32
    %c0_i32_1 = arith.constant 0 : i32
    return %c0_i32, %c0_i32_0 : i32, i32
  }
  func.func @transform_3(%arg0: i32) -> (i32, i32) {
    %c0_i32 = arith.constant 0 : i32
    %c0_i32_0 = arith.constant 0 : i32
    %c0_i32_1 = arith.constant 0 : i32
    return %c0_i32, %c0_i32_0 : i32, i32
  }
  func.func @transform_4(%arg0: i32) -> (i32, i32) {
    %c0_i32 = arith.constant 0 : i32
    %c0_i32_0 = arith.constant 0 : i32
    %c0_i32_1 = arith.constant 0 : i32
    return %c0_i32, %c0_i32_0 : i32, i32
  }
  func.func @transform_5(%arg0: i32) -> (i32, i32) {
    %c0_i32 = arith.constant 0 : i32
    %c0_i32_0 = arith.constant 0 : i32
    %c0_i32_1 = arith.constant 0 : i32
    return %c0_i32, %c0_i32_0 : i32, i32
  }
  func.func @transform_6(%arg0: i32) -> (i32, i32, i32, i32) {
    %c0_i32 = arith.constant 0 : i32
    %c0_i32_0 = arith.constant 0 : i32
    %c0_i32_1 = arith.constant 0 : i32
    %c0_i32_2 = arith.constant 0 : i32
    return %arg0, %c0_i32, %c0_i32_0, %c0_i32_1 : i32, i32, i32, i32
  }
  func.func @transform_7(%arg0: i32) -> (i32, i32, i32, i32) {
    %c0_i32 = arith.constant 0 : i32
    %c0_i32_0 = arith.constant 0 : i32
    %c0_i32_1 = arith.constant 0 : i32
    %c0_i32_2 = arith.constant 0 : i32
    return %arg0, %c0_i32, %c0_i32_0, %c0_i32_1 : i32, i32, i32, i32
  }
  func.func @transform_8(%arg0: i32) -> (i32, i32, i32, i32) {
    %c0_i32 = arith.constant 0 : i32
    %c0_i32_0 = arith.constant 0 : i32
    %c0_i32_1 = arith.constant 0 : i32
    %c0_i32_2 = arith.constant 0 : i32
    return %arg0, %c0_i32, %c0_i32_0, %c0_i32_1 : i32, i32, i32, i32
  }
}

</mosaic_0001>

<llo_original>
// kernel: tpu_custom_call.1
$region0: #{tpu_custom_call.1}
  #allocation0 [shape = 'u32[]', space=smem, size = 0x4, offset = 0x4, fixed_abs, tag = 'smem constant byte address 0x4 - core index']
  #allocation1 [shape = 'u32[144,128]{1,0:T(1,128)}', space=vmem, size = 0x12000, scoped, tag = 'internal scratch']
  %s0 = inlined_call_operand.vmem [shape: f32[4,16], index: 0, kind: input, shape index: {}]
  %s1 = inlined_call_operand.vmem [shape: f32[16,4], index: 1, kind: input, shape index: {}]
  %s2 = inlined_call_operand.vmem [shape: f32[4,4], index: 2, kind: input, shape index: {}]
  %s3 = inlined_call_operand.vmem [shape: f32[4,4], index: 3, kind: input, shape index: {}]
  %s4 = inlined_call_operand.vmem [shape: f32[4,4], index: 4, kind: input, shape index: {}]
  %s5 = inlined_call_operand.vmem [shape: f32[4,4], index: 5, kind: input, shape index: {}]
  %s6 = inlined_call_operand.hbm [shape: f32[2,4,16,16], index: 6, kind: input, shape index: {}]
  %s7 = inlined_call_operand.hbm [shape: f32[2,4,16,16], index: 7, kind: input, shape index: {}]
  %s8 = inlined_call_operand.hbm [shape: f32[2,1,4,4], index: 8, kind: output, shape index: {}]
  %s9 = sld [smem:[#allocation0]]
  $region73: #{tpu_custom_call.1} parent=0
    _
  %s11 = ssub.s32 1, %s9
  %s12 = scalar_select 0, %s11, %s9
  $region1: #{tpu_custom_call.1} parent=0
    #allocation2 [shape = 'u8[65536]{0}', space=vmem, size = 0x10000, scoped, tag = 'input window, operand 6']
    #allocation3 [shape = 's32[2]{0}', space=sflag, size = 0x8, scoped, tag = 'scoped memory for tpu_custom_call.1']
    #allocation4 [shape = 's32[2]{0}', space=sflag, size = 0x8, scoped, tag = 'scoped memory for tpu_custom_call.1']
    #allocation5 [shape = 'u8[65536]{0}', space=vmem, size = 0x10000, scoped, tag = 'input window, operand 7']
    #allocation6 [shape = 's32[2]{0}', space=sflag, size = 0x8, scoped, tag = 'scoped memory for tpu_custom_call.1']
    #allocation7 [shape = 'u8[4096]{0}', space=vmem, size = 0x1000, scoped, tag = 'output window, operand 0']
    %13 = vsyncpa [#allocation3], 0
    %s14 = scalar_lea.sflag [#allocation3], 1
    %15 = vsyncpa %s14, 0
    %16 = vsyncpa [#allocation6], 0
    %s17 = scalar_lea.sflag [#allocation6], 1
    %18 = vsyncpa %s17, 0
    %19 = vsyncpa [#allocation4], 0
    %s20 = scalar_lea.sflag [#allocation4], 1
    %21 = vsyncpa %s20, 0
    loop: start=0, step=1, limit=4
    $region2: #{tpu_custom_call.1} parent=1 // loop_pre_header
      _
    $region3: #{tpu_custom_call.1} parent=1 // loop_header
      %s23 = sphi 0, %s27
      %p24 = scmp.ge.s32.totalorder %s23, 4
      %s31 = sphi 0, %s31
      %s33 = sphi 0, %s31
      %s34 = sphi 0, %s33
      %s48 = sphi 0, %s34
      %s52 = sphi 0, %s52
      %s54 = sphi 0, %s52
      %s55 = sphi 0, %s54
      %s69 = sphi 0, %s55
      %s73 = sphi 0, %s73
      %s75 = sphi 0, %s73
      %s76 = sphi 0, %s75
      %s90 = sphi 0, %s76
      %s94 = sphi 0, %s94
      %s96 = sphi 0, %s94
      %s97 = sphi 0, %s96
      %s111 = sphi 0, %s97
      %s115 = sphi 0, %s115
      %s117 = sphi 0, %s115
      %s118 = sphi 0, %s117
      %s132 = sphi 0, %s118
      %s136 = sphi 0, %s136
      %s138 = sphi 0, %s136
      %s139 = sphi 0, %s138
      %s153 = sphi 0, %s139
      %s159 = sphi 0, %s161
      %s162 = sphi 0, %s159
      %s163 = sphi 0, %s162
      %s179 = sphi 0, %s163
      %s185 = sphi 0, %s187
      %s188 = sphi 0, %s185
      %s189 = sphi 0, %s188
      %s205 = sphi 0, %s189
      %s211 = sphi 0, %s213
      %s214 = sphi 0, %s211
      %s215 = sphi 0, %s214
      %s231 = sphi 0, %s215
    $region4: #{tpu_custom_call.1} parent=1 // loop_header_branch
      %26 = sbr.rel (%p24) target = $region8
    $region5: #{tpu_custom_call.1} parent=1 // loop_body
      %s28 = ssub.s32 %s23, 1
      %s29 = ssub.s32 %s23, 2
      %s30 = sadd.s32 %s23, 1
      %s32 = sadd.s32 %s31, 1
      %p35 = scmp.eq.s32.totalorder %s23, 1
      %p36 = scmp.ne.s32.totalorder %s31, %s33
      %p37 = scmp.eq.s32.totalorder %s23, 0
      %p38 = por %p36, %p37
      %p39 = scmp.ne.s32.totalorder %s31, %s33
      %p40 = scmp.eq.s32.totalorder %s28, 1
      %p41 = por %p39, %p40
      %p42 = scmp.ne.s32.totalorder %s33, %s34
      %p43 = scmp.eq.s32.totalorder %s28, 0
      %p44 = por %p42, %p43
      %p45 = scmp.ne.s32.totalorder %s33, %s34
      %p46 = scmp.eq.s32.totalorder %s29, 1
      %p47 = por %p45, %p46
      %p49 = scmp.ne.s32.totalorder %s34, %s48
      %p50 = scmp.eq.s32.totalorder %s29, 0
      %p51 = por %p49, %p50
      %s53 = sadd.s32 %s52, 1
      %p56 = scmp.eq.s32.totalorder %s23, 1
      %p57 = scmp.ne.s32.totalorder %s52, %s54
      %p58 = scmp.eq.s32.totalorder %s23, 0
      %p59 = por %p57, %p58
      %p60 = scmp.ne.s32.totalorder %s52, %s54
      %p61 = scmp.eq.s32.totalorder %s28, 1
      %p62 = por %p60, %p61
      %p63 = scmp.ne.s32.totalorder %s54, %s55
      %p64 = scmp.eq.s32.totalorder %s28, 0
      %p65 = por %p63, %p64
      %p66 = scmp.ne.s32.totalorder %s54, %s55
      %p67 = scmp.eq.s32.totalorder %s29, 1
      %p68 = por %p66, %p67
      %p70 = scmp.ne.s32.totalorder %s55, %s69
      %p71 = scmp.eq.s32.totalorder %s29, 0
      %p72 = por %p70, %p71
      %s74 = sadd.s32 %s73, 1
      %p77 = scmp.eq.s32.totalorder %s23, 1
      %p78 = scmp.ne.s32.totalorder %s73, %s75
      %p79 = scmp.eq.s32.totalorder %s23, 0
      %p80 = por %p78, %p79
      %p81 = scmp.ne.s32.totalorder %s73, %s75
      %p82 = scmp.eq.s32.totalorder %s28, 1
      %p83 = por %p81, %p82
      %p84 = scmp.ne.s32.totalorder %s75, %s76
      %p85 = scmp.eq.s32.totalorder %s28, 0
      %p86 = por %p84, %p85
      %p87 = scmp.ne.s32.totalorder %s75, %s76
      %p88 = scmp.eq.s32.totalorder %s29, 1
      %p89 = por %p87, %p88
      %p91 = scmp.ne.s32.totalorder %s76, %s90
      %p92 = scmp.eq.s32.totalorder %s29, 0
      %p93 = por %p91, %p92
      %s95 = sadd.s32 %s94, 1
      %p98 = scmp.eq.s32.totalorder %s23, 1
      %p99 = scmp.ne.s32.totalorder %s94, %s96
      %p100 = scmp.eq.s32.totalorder %s23, 0
      %p101 = por %p99, %p100
      %p102 = scmp.ne.s32.totalorder %s94, %s96
      %p103 = scmp.eq.s32.totalorder %s28, 1
      %p104 = por %p102, %p103
      %p105 = scmp.ne.s32.totalorder %s96, %s97
      %p106 = scmp.eq.s32.totalorder %s28, 0
      %p107 = por %p105, %p106
      %p108 = scmp.ne.s32.totalorder %s96, %s97
      %p109 = scmp.eq.s32.totalorder %s29, 1
      %p110 = por %p108, %p109
      %p112 = scmp.ne.s32.totalorder %s97, %s111
      %p113 = scmp.eq.s32.totalorder %s29, 0
      %p114 = por %p112, %p113
      %s116 = sadd.s32 %s115, 1
      %p119 = scmp.eq.s32.totalorder %s23, 1
      %p120 = scmp.ne.s32.totalorder %s115, %s117
      %p121 = scmp.eq.s32.totalorder %s23, 0
      %p122 = por %p120, %p121
      %p123 = scmp.ne.s32.totalorder %s115, %s117
      %p124 = scmp.eq.s32.totalorder %s28, 1
      %p125 = por %p123, %p124
      %p126 = scmp.ne.s32.totalorder %s117, %s118
      %p127 = scmp.eq.s32.totalorder %s28, 0
      %p128 = por %p126, %p127
      %p129 = scmp.ne.s32.totalorder %s117, %s118
      %p130 = scmp.eq.s32.totalorder %s29, 1
      %p131 = por %p129, %p130
      %p133 = scmp.ne.s32.totalorder %s118, %s132
      %p134 = scmp.eq.s32.totalorder %s29, 0
      %p135 = por %p133, %p134
      %s137 = sadd.s32 %s136, 1
      %p140 = scmp.eq.s32.totalorder %s23, 1
      %p141 = scmp.ne.s32.totalorder %s136, %s138
      %p142 = scmp.eq.s32.totalorder %s23, 0
      %p143 = por %p141, %p142
      %p144 = scmp.ne.s32.totalorder %s136, %s138
      %p145 = scmp.eq.s32.totalorder %s28, 1
      %p146 = por %p144, %p145
      %p147 = scmp.ne.s32.totalorder %s138, %s139
      %p148 = scmp.eq.s32.totalorder %s28, 0
      %p149 = por %p147, %p148
      %p150 = scmp.ne.s32.totalorder %s138, %s139
      %p151 = scmp.eq.s32.totalorder %s29, 1
      %p152 = por %p150, %p151
      %p154 = scmp.ne.s32.totalorder %s139, %s153
      %p155 = scmp.eq.s32.totalorder %s29, 0
      %p156 = por %p154, %p155
      %s157 = ssub.s32 %s23, %s30
      %p158 = scmp.eq.s32.totalorder %s157, 0
      %s160 = sadd.s32 %s159, 1
      %s161 = scalar_select %p158, %s159, %s160
      %p164 = pneg %p158
      %p165 = scmp.eq.s32.totalorder %s23, 1
      %p166 = por %p164, %p165
      %p167 = scmp.ne.s32.totalorder %s159, %s162
      %p168 = scmp.eq.s32.totalorder %s23, 0
      %p169 = por %p167, %p168
      %p170 = scmp.ne.s32.totalorder %s159, %s162
      %p171 = scmp.eq.s32.totalorder %s28, 1
      %p172 = por %p170, %p171
      %p173 = scmp.ne.s32.totalorder %s162, %s163
      %p174 = scmp.eq.s32.totalorder %s28, 0
      %p175 = por %p173, %p174
      %p176 = scmp.ne.s32.totalorder %s162, %s163
      %p177 = scmp.eq.s32.totalorder %s29, 1
      %p178 = por %p176, %p177
      %p180 = scmp.ne.s32.totalorder %s163, %s179
      %p181 = scmp.eq.s32.totalorder %s29, 0
      %p182 = por %p180, %p181
      %s183 = ssub.s32 %s23, %s30
      %p184 = scmp.eq.s32.totalorder %s183, 0
      %s186 = sadd.s32 %s185, 1
      %s187 = scalar_select %p184, %s185, %s186
      %p190 = pneg %p184
      %p191 = scmp.eq.s32.totalorder %s23, 1
      %p192 = por %p190, %p191
      %p193 = scmp.ne.s32.totalorder %s185, %s188
      %p194 = scmp.eq.s32.totalorder %s23, 0
      %p195 = por %p193, %p194
      %p196 = scmp.ne.s32.totalorder %s185, %s188
      %p197 = scmp.eq.s32.totalorder %s28, 1
      %p198 = por %p196, %p197
      %p199 = scmp.ne.s32.totalorder %s188, %s189
      %p200 = scmp.eq.s32.totalorder %s28, 0
      %p201 = por %p199, %p200
      %p202 = scmp.ne.s32.totalorder %s188, %s189
      %p203 = scmp.eq.s32.totalorder %s29, 1
      %p204 = por %p202, %p203
      %p206 = scmp.ne.s32.totalorder %s189, %s205
      %p207 = scmp.eq.s32.totalorder %s29, 0
      %p208 = por %p206, %p207
      %s209 = ssub.s32 %s23, %s30
      %p210 = scmp.eq.s32.totalorder %s209, 0
      %s212 = sadd.s32 %s211, 1
      %s213 = scalar_select %p210, %s211, %s212
      %p216 = pneg %p210
      %p217 = scmp.eq.s32.totalorder %s23, 1
      %p218 = por %p216, %p217
      %p219 = scmp.ne.s32.totalorder %s211, %s214
      %p220 = scmp.eq.s32.totalorder %s23, 0
      %p221 = por %p219, %p220
      %p222 = scmp.ne.s32.totalorder %s211, %s214
      %p223 = scmp.eq.s32.totalorder %s28, 1
      %p224 = por %p222, %p223
      %p225 = scmp.ne.s32.totalorder %s214, %s215
      %p226 = scmp.eq.s32.totalorder %s28, 0
      %p227 = por %p225, %p226
      %p228 = scmp.ne.s32.totalorder %s214, %s215
      %p229 = scmp.eq.s32.totalorder %s29, 1
      %p230 = por %p228, %p229
      %p232 = scmp.ne.s32.totalorder %s215, %s231
      %p233 = scmp.eq.s32.totalorder %s29, 0
      %p234 = por %p232, %p233
      %p235 = scmp.le.s32.totalorder 1, %s23
      %p236 = scmp.lt.s32.totalorder %s23, 3
      %p237 = pnand %p235, %p236
      %p238 = pneg %p237
      // Predicated region
      $region9: #{tpu_custom_call.1} parent=5 // pred_check
        _
      $region10: #{tpu_custom_call.1} parent=5 // pred_check_branch
        %240 = sbr.rel (%p237) target = $region12
      $region11: #{tpu_custom_call.1} parent=5 // pred_region
        %s241 = ssub.s32 %s23, 1
        // Predicated region
        $region13: #{tpu_custom_call.1} parent=11 // pred_check
          %p242 = pneg %p44
        $region14: #{tpu_custom_call.1} parent=11 // pred_check_branch
          %244 = sbr.rel (%p242) target = $region16
        $region15: #{tpu_custom_call.1} parent=11 // pred_region
          _
        $region16: #{tpu_custom_call.1} parent=11 // pred_fallthru
          _
        // Predicated region
        $region17: #{tpu_custom_call.1} parent=11 // pred_check
          %p245 = pneg %p65
        $region18: #{tpu_custom_call.1} parent=11 // pred_check_branch
          %247 = sbr.rel (%p245) target = $region20
        $region19: #{tpu_custom_call.1} parent=11 // pred_region
          _
        $region20: #{tpu_custom_call.1} parent=11 // pred_fallthru
          _
        // Predicated region
        $region21: #{tpu_custom_call.1} parent=11 // pred_check
          %p248 = pneg %p86
        $region22: #{tpu_custom_call.1} parent=11 // pred_check_branch
          %250 = sbr.rel (%p248) target = $region24
        $region23: #{tpu_custom_call.1} parent=11 // pred_region
          _
        $region24: #{tpu_custom_call.1} parent=11 // pred_fallthru
          _
        // Predicated region
        $region25: #{tpu_custom_call.1} parent=11 // pred_check
          %p251 = pneg %p107
        $region26: #{tpu_custom_call.1} parent=11 // pred_check_branch
          %253 = sbr.rel (%p251) target = $region28
        $region27: #{tpu_custom_call.1} parent=11 // pred_region
          _
        $region28: #{tpu_custom_call.1} parent=11 // pred_fallthru
          _
        // Predicated region
        $region29: #{tpu_custom_call.1} parent=11 // pred_check
          %p254 = pneg %p128
        $region30: #{tpu_custom_call.1} parent=11 // pred_check_branch
          %256 = sbr.rel (%p254) target = $region32
        $region31: #{tpu_custom_call.1} parent=11 // pred_region
          _
        $region32: #{tpu_custom_call.1} parent=11 // pred_fallthru
          _
        // Predicated region
        $region33: #{tpu_custom_call.1} parent=11 // pred_check
          %p257 = pneg %p149
        $region34: #{tpu_custom_call.1} parent=11 // pred_check_branch
          %259 = sbr.rel (%p257) target = $region36
        $region35: #{tpu_custom_call.1} parent=11 // pred_region
          _
        $region36: #{tpu_custom_call.1} parent=11 // pred_fallthru
          _
      $region12: #{tpu_custom_call.1} parent=5 // pred_fallthru
        _
      %p260 = scmp.lt.s32.totalorder %s23, 2
      // Predicated region
      $region37: #{tpu_custom_call.1} parent=5 // pred_check
        %p261 = pneg %p260
      $region38: #{tpu_custom_call.1} parent=5 // pred_check_branch
        %263 = sbr.rel (%p261) target = $region40
      $region39: #{tpu_custom_call.1} parent=5 // pred_region
        // Predicated region
        $region41: #{tpu_custom_call.1} parent=39 // pred_check
          %p264 = pneg %p169
        $region42: #{tpu_custom_call.1} parent=39 // pred_check_branch
          %266 = sbr.rel (%p264) target = $region44
        $region43: #{tpu_custom_call.1} parent=39 // pred_region
          %s267 = sand.u32 %s159, 1
          %s268 = scalar_lea.sflag [#allocation3], %s267
          %s269 = sand.u32 %s159, 1
          %s270 = smul.addr %s269, 64
          %s271 = scalar_lea.vmem [#allocation2], %s270
          %s273 = ssub.s32 1024, 1024
          %274 = vsyncadd %s268, %s273
          %s275 = smul.addr %s23, 8
          %s276 = smul.addr %s275, 128
          %s277 = scalar_lea.hbm %s6, %s276
          %s278 = sshll.u32 %s271, 4
          %s279 = int_to_ptr.vmem [resolvable:$true] %s278
          %284 = dma.hbm_to_vmem [thread:$0]  %s277, 1024, %s279, %s268, 128, 128, 8
        $region44: #{tpu_custom_call.1} parent=39 // pred_fallthru
          _
        // Predicated region
        $region45: #{tpu_custom_call.1} parent=39 // pred_check
          %p285 = pneg %p195
        $region46: #{tpu_custom_call.1} parent=39 // pred_check_branch
          %287 = sbr.rel (%p285) target = $region48
        $region47: #{tpu_custom_call.1} parent=39 // pred_region
          %s288 = sand.u32 %s185, 1
          %s289 = scalar_lea.sflag [#allocation6], %s288
          %s290 = sand.u32 %s185, 1
          %s291 = smul.addr %s290, 64
          %s292 = scalar_lea.vmem [#allocation5], %s291
          %s294 = ssub.s32 1024, 1024
          %295 = vsyncadd %s289, %s294
          %s296 = smul.addr %s23, 8
          %s297 = smul.addr %s296, 128
          %s298 = scalar_lea.hbm %s7, %s297
          %s299 = sshll.u32 %s292, 4
          %s300 = int_to_ptr.vmem [resolvable:$true] %s299
          %305 = dma.hbm_to_vmem [thread:$0]  %s298, 1024, %s300, %s289, 128, 128, 8
        $region48: #{tpu_custom_call.1} parent=39 // pred_fallthru
          _
      $region40: #{tpu_custom_call.1} parent=5 // pred_fallthru
        _
      %p306 = scmp.le.s32.totalorder 1, %s23
      %p307 = scmp.lt.s32.totalorder %s23, 3
      %p308 = pnand %p306, %p307
      %p309 = pneg %p308
      // Predicated region
      $region49: #{tpu_custom_call.1} parent=5 // pred_check
        _
      $region50: #{tpu_custom_call.1} parent=5 // pred_check_branch
        %311 = sbr.rel (%p308) target = $region52
      $region51: #{tpu_custom_call.1} parent=5 // pred_region
        %s312 = ssub.s32 %s23, 1
        %s313 = sand.u32 %s162, 1
        %s314 = scalar_lea.sflag [#allocation3], %s313
        %s315 = sand.u32 %s162, 1
        %s316 = smul.addr %s315, 64
        %s317 = scalar_lea.vmem [#allocation2], %s316
        // Predicated region
        $region53: #{tpu_custom_call.1} parent=51 // pred_check
          %p318 = pneg %p175
        $region54: #{tpu_custom_call.1} parent=51 // pred_check_branch
          %320 = sbr.rel (%p318) target = $region56
        $region55: #{tpu_custom_call.1} parent=51 // pred_region
          %321 = dma.done %s314, 1024
        $region56: #{tpu_custom_call.1} parent=51 // pred_fallthru
          _
        %s322 = sand.u32 %s188, 1
        %s323 = scalar_lea.sflag [#allocation6], %s322
        %s324 = sand.u32 %s188, 1
        %s325 = smul.addr %s324, 64
        %s326 = scalar_lea.vmem [#allocation5], %s325
        // Predicated region
        $region57: #{tpu_custom_call.1} parent=51 // pred_check
          %p327 = pneg %p201
        $region58: #{tpu_custom_call.1} parent=51 // pred_check_branch
          %329 = sbr.rel (%p327) target = $region60
        $region59: #{tpu_custom_call.1} parent=51 // pred_region
          %330 = dma.done %s323, 1024
        $region60: #{tpu_custom_call.1} parent=51 // pred_fallthru
          _
        %p331 = pneg %p44
        %p332 = pneg %p41
        %p333 = pneg %p65
        %p334 = pneg %p62
        %p335 = pneg %p86
        %p336 = pneg %p83
        %p337 = pneg %p107
        %p338 = pneg %p104
        %p339 = pneg %p128
        %p340 = pneg %p125
        %p341 = pneg %p149
        %p342 = pneg %p146
        %s343 = sand.u32 %s162, 1
        %s344 = scalar_lea.sflag [#allocation3], %s343
        %s345 = sand.u32 %s162, 1
        %s346 = smul.addr %s345, 64
        %s347 = scalar_lea.vmem [#allocation2], %s346
        %p348 = pneg %p175
        %p349 = pneg %p172
        %s350 = sand.u32 %s188, 1
        %s351 = scalar_lea.sflag [#allocation6], %s350
        %s352 = sand.u32 %s188, 1
        %s353 = smul.addr %s352, 64
        %s354 = scalar_lea.vmem [#allocation5], %s353
        %p355 = pneg %p201
        %p356 = pneg %p198
        %p357 = pneg %p227
        %p358 = pneg %p224
        %s359 = sand.u32 %s214, 1
        %s360 = scalar_lea.sflag [#allocation4], %s359
        %s361 = sand.u32 %s214, 1
        %s362 = smul.addr %s361, 4
        %s363 = scalar_lea.vmem [#allocation7], %s362
        %v364 = vld [vmem:[%s0] sm:$0xf]
        %v365 = vld [vmem:[%s1] sm:$0xff]
        %v366 = vld [vmem:[%s1 + $0x8] sm:$0xff]
        %v367 = vld [vmem:[%s2] sm:$0xf]
        %v368 = vld [vmem:[%s3] sm:$0xf]
        %v369 = vld [vmem:[%s4] sm:$0xf]
        %v370 = vld [vmem:[%s5] sm:$0xf]
        %v371 = vld [vmem:[%s317] sm:$0xff]
        %v372 = vld [vmem:[%s317 + $0x8] sm:$0xff]
        %v373 = vld [vmem:[%s317 + $0x10] sm:$0xff]
        %v374 = vld [vmem:[%s317 + $0x18] sm:$0xff]
        %v375 = vld [vmem:[%s317 + $0x20] sm:$0xff]
        %v376 = vld [vmem:[%s317 + $0x28] sm:$0xff]
        %v377 = vld [vmem:[%s317 + $0x30] sm:$0xff]
        %v378 = vld [vmem:[%s317 + $0x38] sm:$0xff]
        %v379 = vld [vmem:[%s326] sm:$0xff]
        %v380 = vld [vmem:[%s326 + $0x8] sm:$0xff]
        %v381 = vld [vmem:[%s326 + $0x10] sm:$0xff]
        %v382 = vld [vmem:[%s326 + $0x18] sm:$0xff]
        %v383 = vld [vmem:[%s326 + $0x20] sm:$0xff]
        %v384 = vld [vmem:[%s326 + $0x28] sm:$0xff]
        %v385 = vld [vmem:[%s326 + $0x30] sm:$0xff]
        %v386 = vld [vmem:[%s326 + $0x38] sm:$0xff]
        %v387 = vsub.f32 %v371, %v379
        %v388 = vsub.f32 %v372, %v380
        %v389 = vsub.f32 %v373, %v381
        %v390 = vsub.f32 %v374, %v382
        %v391 = vsub.f32 %v375, %v383
        %v392 = vsub.f32 %v376, %v384
        %v393 = vsub.f32 %v377, %v385
        %v394 = vsub.f32 %v378, %v386
        %vm395 = vcmask 130048
        %v396 = vsel %vm395, %v387, 0.0
        %v397 = vsel %vm395, %v389, 0.0
        %v398 = vadd.f32 %v396, %v397
        %v399 = vsel %vm395, %v391, 0.0
        %v400 = vadd.f32 %v398, %v399
        %v401 = vsel %vm395, %v393, 0.0
        %v402 = vadd.f32 %v400, %v401
        %v403 = vsel %vm395, %v388, 0.0
        %v404 = vsel %vm395, %v390, 0.0
        %v405 = vadd.f32 %v403, %v404
        %v406 = vsel %vm395, %v392, 0.0
        %v407 = vadd.f32 %v405, %v406
        %v408 = vsel %vm395, %v394, 0.0
        %v409 = vadd.f32 %v407, %v408
        %v410 = vmul.f32 %v402, 0.25
        %v411 = vmul.f32 %v409, 0.25
        %v413 = vsel %vm395, %v364, 0
        %415 = vmatprep.subr.mxu0 0.0
        %416 = vmatpush1.msra.mxu0 0.0
        %417 = vmatprep.subr.mxu0 0.0
        %418 = vmatpush1.msra.mxu0 0.0
        %419 = vmatprep.subr.mxu0 0.0
        %420 = vmatpush1.msra.mxu0 0.0
        %421 = vmatprep.subr.mxu0 0.0
        %422 = vmatpush1.msra.mxu0 0.0
        %423 = vmatprep.subr.mxu0 0.0
        %424 = vmatpush1.msra.mxu0 0.0
        %425 = vmatprep.subr.mxu0 0.0
        %426 = vmatpush1.msra.mxu0 0.0
        %427 = vmatprep.subr.mxu0 0.0
        %428 = vmatpush1.msra.mxu0 0.0
        %429 = vmatprep.subr.mxu0 0.0
        %430 = vmatpush1.msra.mxu0 0.0
        %431 = vmatprep.subr.mxu0 0.0
        %432 = vmatpush1.msra.mxu0 0.0
        %433 = vmatprep.subr.mxu0 0.0
        %434 = vmatpush1.msra.mxu0 0.0
        %435 = vmatprep.subr.mxu0 0.0
        %436 = vmatpush1.msra.mxu0 0.0
        %437 = vmatprep.subr.mxu0 0.0
        %438 = vmatpush1.msra.mxu0 0.0
        %439 = vmatprep.subr.mxu0 0.0
        %440 = vmatpush1.msra.mxu0 0.0
        %441 = vmatprep.subr.mxu0 0.0
        %442 = vmatpush1.msra.mxu0 0.0
        %443 = vmatprep.subr.mxu0 0.0
        %444 = vmatpush1.msra.mxu0 %v411
        %445 = vmatprep.subr.mxu0 0.0
        %446 = vmatpush1.msra.mxu0 %v410
        %447 = vmatprep.subr.mxu0 0.0
        %448 = vmatpush2.msra.mxu0 0.0
        %449 = vmatprep.subr.mxu0 0.0
        %450 = vmatpush2.msra.mxu0 0.0
        %451 = vmatprep.subr.mxu0 0.0
        %452 = vmatpush2.msra.mxu0 0.0
        %453 = vmatprep.subr.mxu0 0.0
        %454 = vmatpush2.msra.mxu0 0.0
        %455 = vmatprep.subr.mxu0 0.0
        %456 = vmatpush2.msra.mxu0 0.0
        %457 = vmatprep.subr.mxu0 0.0
        %458 = vmatpush2.msra.mxu0 0.0
        %459 = vmatprep.subr.mxu0 0.0
        %460 = vmatpush2.msra.mxu0 0.0
        %461 = vmatprep.subr.mxu0 0.0
        %462 = vmatpush2.msra.mxu0 0.0
        %463 = vmatprep.subr.mxu0 0.0
        %464 = vmatpush2.msra.mxu0 0.0
        %465 = vmatprep.subr.mxu0 0.0
        %466 = vmatpush2.msra.mxu0 0.0
        %467 = vmatprep.subr.mxu0 0.0
        %468 = vmatpush2.msra.mxu0 0.0
        %469 = vmatprep.subr.mxu0 0.0
        %470 = vmatpush2.msra.mxu0 0.0
        %471 = vmatprep.subr.mxu0 0.0
        %472 = vmatpush2.msra.mxu0 0.0
        %473 = vmatprep.subr.mxu0 0.0
        %474 = vmatpush2.msra.mxu0 0.0
        %475 = vmatprep.subr.mxu0 0.0
        %476 = vmatpush2.msra.mxu0 0.0
        %477 = vmatprep.subr.mxu0 0.0
        %478 = vmatpush2.msra.mxu0 0.0
        %479 = vmatprep.mubr.f32.mxu0 0.0
        %480 = vmatmul.mubr.f32.gmra.mxu0 %v413
        %v481 = vpop.f32.mrf.mxu0
        %v482 = vadd.f32 0.0, %v481
        %v483 = vpop.f32.mrf.mxu0
        %484 = vdwg.mxu0
        %v486 = vsel %vm395, %v482, 0
        %488 = vmatprep.subr.mxu0 0.0
        %489 = vmatpush1.msra.mxu0 0.0
        %490 = vmatprep.subr.mxu0 0.0
        %491 = vmatpush1.msra.mxu0 0.0
        %492 = vmatprep.subr.mxu0 0.0
        %493 = vmatpush1.msra.mxu0 0.0
        %494 = vmatprep.subr.mxu0 0.0
        %495 = vmatpush1.msra.mxu0 0.0
        %496 = vmatprep.subr.mxu0 0.0
        %497 = vmatpush1.msra.mxu0 0.0
        %498 = vmatprep.subr.mxu0 0.0
        %499 = vmatpush1.msra.mxu0 0.0
        %500 = vmatprep.subr.mxu0 0.0
        %501 = vmatpush1.msra.mxu0 0.0
        %502 = vmatprep.subr.mxu0 0.0
        %503 = vmatpush1.msra.mxu0 0.0
        %504 = vmatprep.subr.mxu0 0.0
        %505 = vmatpush1.msra.mxu0 0.0
        %506 = vmatprep.subr.mxu0 0.0
        %507 = vmatpush1.msra.mxu0 0.0
        %508 = vmatprep.subr.mxu0 0.0
        %509 = vmatpush1.msra.mxu0 0.0
        %510 = vmatprep.subr.mxu0 0.0
        %511 = vmatpush1.msra.mxu0 0.0
        %512 = vmatprep.subr.mxu0 0.0
        %513 = vmatpush1.msra.mxu0 0.0
        %514 = vmatprep.subr.mxu0 0.0
        %515 = vmatpush1.msra.mxu0 0.0
        %516 = vmatprep.subr.mxu0 0.0
        %517 = vmatpush1.msra.mxu0 %v366
        %518 = vmatprep.subr.mxu0 0.0
        %519 = vmatpush1.msra.mxu0 %v365
        %520 = vmatprep.subr.mxu0 0.0
        %521 = vmatpush2.msra.mxu0 0.0
        %522 = vmatprep.subr.mxu0 0.0
        %523 = vmatpush2.msra.mxu0 0.0
        %524 = vmatprep.subr.mxu0 0.0
        %525 = vmatpush2.msra.mxu0 0.0
        %526 = vmatprep.subr.mxu0 0.0
        %527 = vmatpush2.msra.mxu0 0.0
        %528 = vmatprep.subr.mxu0 0.0
        %529 = vmatpush2.msra.mxu0 0.0
        %530 = vmatprep.subr.mxu0 0.0
        %531 = vmatpush2.msra.mxu0 0.0
        %532 = vmatprep.subr.mxu0 0.0
        %533 = vmatpush2.msra.mxu0 0.0
        %534 = vmatprep.subr.mxu0 0.0
        %535 = vmatpush2.msra.mxu0 0.0
        %536 = vmatprep.subr.mxu0 0.0
        %537 = vmatpush2.msra.mxu0 0.0
        %538 = vmatprep.subr.mxu0 0.0
        %539 = vmatpush2.msra.mxu0 0.0
        %540 = vmatprep.subr.mxu0 0.0
        %541 = vmatpush2.msra.mxu0 0.0
        %542 = vmatprep.subr.mxu0 0.0
        %543 = vmatpush2.msra.mxu0 0.0
        %544 = vmatprep.subr.mxu0 0.0
        %545 = vmatpush2.msra.mxu0 0.0
        %546 = vmatprep.subr.mxu0 0.0
        %547 = vmatpush2.msra.mxu0 0.0
        %548 = vmatprep.subr.mxu0 0.0
        %549 = vmatpush2.msra.mxu0 0.0
        %550 = vmatprep.subr.mxu0 0.0
        %551 = vmatpush2.msra.mxu0 0.0
        %552 = vmatprep.mubr.f32.mxu0 0.0
        %553 = vmatmul.mubr.f32.gmra.mxu0 %v486
        %v554 = vpop.f32.mrf.mxu0
        %v555 = vadd.f32 0.0, %v554
        %v556 = vpop.f32.mrf.mxu0
        %557 = vdwg.mxu0
        %vm558 = vcmask 31744
        %v560 = vsel %vm558, %v555, 0
        %vm562 = vcmask 1043456
        %v564 = vsel %vm562, %v369, 0
        %566 = vmatprep.subr.mxu0 0.0
        %567 = vmatpush1.msra.mxu0 0.0
        %568 = vmatprep.subr.mxu0 0.0
        %569 = vmatpush1.msra.mxu0 0.0
        %570 = vmatprep.subr.mxu0 0.0
        %571 = vmatpush1.msra.mxu0 0.0
        %572 = vmatprep.subr.mxu0 0.0
        %573 = vmatpush1.msra.mxu0 0.0
        %574 = vmatprep.subr.mxu0 0.0
        %575 = vmatpush1.msra.mxu0 0.0
        %576 = vmatprep.subr.mxu0 0.0
        %577 = vmatpush1.msra.mxu0 0.0
        %578 = vmatprep.subr.mxu0 0.0
        %579 = vmatpush1.msra.mxu0 0.0
        %580 = vmatprep.subr.mxu0 0.0
        %581 = vmatpush1.msra.mxu0 0.0
        %582 = vmatprep.subr.mxu0 0.0
        %583 = vmatpush1.msra.mxu0 0.0
        %584 = vmatprep.subr.mxu0 0.0
        %585 = vmatpush1.msra.mxu0 0.0
        %586 = vmatprep.subr.mxu0 0.0
        %587 = vmatpush1.msra.mxu0 0.0
        %588 = vmatprep.subr.mxu0 0.0
        %589 = vmatpush1.msra.mxu0 0.0
        %590 = vmatprep.subr.mxu0 0.0
        %591 = vmatpush1.msra.mxu0 0.0
        %592 = vmatprep.subr.mxu0 0.0
        %593 = vmatpush1.msra.mxu0 0.0
        %594 = vmatprep.subr.mxu0 0.0
        %595 = vmatpush1.msra.mxu0 0.0
        %596 = vmatprep.subr.mxu0 0.0
        %597 = vmatpush1.msra.mxu0 %v564
        %598 = vmatprep.subr.mxu0 0.0
        %599 = vmatpush2.msra.mxu0 0.0
        %600 = vmatprep.subr.mxu0 0.0
        %601 = vmatpush2.msra.mxu0 0.0
        %602 = vmatprep.subr.mxu0 0.0
        %603 = vmatpush2.msra.mxu0 0.0
        %604 = vmatprep.subr.mxu0 0.0
        %605 = vmatpush2.msra.mxu0 0.0
        %606 = vmatprep.subr.mxu0 0.0
        %607 = vmatpush2.msra.mxu0 0.0
        %608 = vmatprep.subr.mxu0 0.0
        %609 = vmatpush2.msra.mxu0 0.0
        %610 = vmatprep.subr.mxu0 0.0
        %611 = vmatpush2.msra.mxu0 0.0
        %612 = vmatprep.subr.mxu0 0.0
        %613 = vmatpush2.msra.mxu0 0.0
        %614 = vmatprep.subr.mxu0 0.0
        %615 = vmatpush2.msra.mxu0 0.0
        %616 = vmatprep.subr.mxu0 0.0
        %617 = vmatpush2.msra.mxu0 0.0
        %618 = vmatprep.subr.mxu0 0.0
        %619 = vmatpush2.msra.mxu0 0.0
        %620 = vmatprep.subr.mxu0 0.0
        %621 = vmatpush2.msra.mxu0 0.0
        %622 = vmatprep.subr.mxu0 0.0
        %623 = vmatpush2.msra.mxu0 0.0
        %624 = vmatprep.subr.mxu0 0.0
        %625 = vmatpush2.msra.mxu0 0.0
        %626 = vmatprep.subr.mxu0 0.0
        %627 = vmatpush2.msra.mxu0 0.0
        %628 = vmatprep.subr.mxu0 0.0
        %629 = vmatpush2.msra.mxu0 0.0
        %630 = vmatprep.mubr.f32.mxu0 0.0
        %631 = vmatmul.mubr.f32.gmra.mxu0 %v560
        %v632 = vpop.f32.mrf.mxu0
        %v633 = vadd.f32 0.0, %v632
        %v634 = vpop.f32.mrf.mxu0
        %635 = vdwg.mxu0
        %v636 = vsub.f32 %v555, %v633
        %v638 = vsel %vm562, %v370, 0
        %640 = vmatprep.subr.mxu0 0.0
        %641 = vmatpush1.msra.mxu0 0.0
        %642 = vmatprep.subr.mxu0 0.0
        %643 = vmatpush1.msra.mxu0 0.0
        %644 = vmatprep.subr.mxu0 0.0
        %645 = vmatpush1.msra.mxu0 0.0
        %646 = vmatprep.subr.mxu0 0.0
        %647 = vmatpush1.msra.mxu0 0.0
        %648 = vmatprep.subr.mxu0 0.0
        %649 = vmatpush1.msra.mxu0 0.0
        %650 = vmatprep.subr.mxu0 0.0
        %651 = vmatpush1.msra.mxu0 0.0
        %652 = vmatprep.subr.mxu0 0.0
        %653 = vmatpush1.msra.mxu0 0.0
        %654 = vmatprep.subr.mxu0 0.0
        %655 = vmatpush1.msra.mxu0 0.0
        %656 = vmatprep.subr.mxu0 0.0
        %657 = vmatpush1.msra.mxu0 0.0
        %658 = vmatprep.subr.mxu0 0.0
        %659 = vmatpush1.msra.mxu0 0.0
        %660 = vmatprep.subr.mxu0 0.0
        %661 = vmatpush1.msra.mxu0 0.0
        %662 = vmatprep.subr.mxu0 0.0
        %663 = vmatpush1.msra.mxu0 0.0
        %664 = vmatprep.subr.mxu0 0.0
        %665 = vmatpush1.msra.mxu0 0.0
        %666 = vmatprep.subr.mxu0 0.0
        %667 = vmatpush1.msra.mxu0 0.0
        %668 = vmatprep.subr.mxu0 0.0
        %669 = vmatpush1.msra.mxu0 0.0
        %670 = vmatprep.subr.mxu0 0.0
        %671 = vmatpush1.msra.mxu0 %v638
        %672 = vmatprep.subr.mxu0 0.0
        %673 = vmatpush2.msra.mxu0 0.0
        %674 = vmatprep.subr.mxu0 0.0
        %675 = vmatpush2.msra.mxu0 0.0
        %676 = vmatprep.subr.mxu0 0.0
        %677 = vmatpush2.msra.mxu0 0.0
        %678 = vmatprep.subr.mxu0 0.0
        %679 = vmatpush2.msra.mxu0 0.0
        %680 = vmatprep.subr.mxu0 0.0
        %681 = vmatpush2.msra.mxu0 0.0
        %682 = vmatprep.subr.mxu0 0.0
        %683 = vmatpush2.msra.mxu0 0.0
        %684 = vmatprep.subr.mxu0 0.0
        %685 = vmatpush2.msra.mxu0 0.0
        %686 = vmatprep.subr.mxu0 0.0
        %687 = vmatpush2.msra.mxu0 0.0
        %688 = vmatprep.subr.mxu0 0.0
        %689 = vmatpush2.msra.mxu0 0.0
        %690 = vmatprep.subr.mxu0 0.0
        %691 = vmatpush2.msra.mxu0 0.0
        %692 = vmatprep.subr.mxu0 0.0
        %693 = vmatpush2.msra.mxu0 0.0
        %694 = vmatprep.subr.mxu0 0.0
        %695 = vmatpush2.msra.mxu0 0.0
        %696 = vmatprep.subr.mxu0 0.0
        %697 = vmatpush2.msra.mxu0 0.0
        %698 = vmatprep.subr.mxu0 0.0
        %699 = vmatpush2.msra.mxu0 0.0
        %700 = vmatprep.subr.mxu0 0.0
        %701 = vmatpush2.msra.mxu0 0.0
        %702 = vmatprep.subr.mxu0 0.0
        %703 = vmatpush2.msra.mxu0 0.0
        %704 = vmatprep.mubr.f32.mxu0 0.0
        %705 = vmatmul.mubr.f32.gmra.mxu0 %v560
        %v706 = vpop.f32.mrf.mxu0
        %v707 = vadd.f32 0.0, %v706
        %v708 = vpop.f32.mrf.mxu0
        %709 = vdwg.mxu0
        %v710 = vsub.f32 %v555, %v707
        %v712 = vsel %vm558, %v367, 0
        %v714 = vsel %vm562, %v555, 0
        %716 = vmatprep.subr.mxu0 0.0
        %717 = vmatpush1.msra.mxu0 0.0
        %718 = vmatprep.subr.mxu0 0.0
        %719 = vmatpush1.msra.mxu0 0.0
        %720 = vmatprep.subr.mxu0 0.0
        %721 = vmatpush1.msra.mxu0 0.0
        %722 = vmatprep.subr.mxu0 0.0
        %723 = vmatpush1.msra.mxu0 0.0
        %724 = vmatprep.subr.mxu0 0.0
        %725 = vmatpush1.msra.mxu0 0.0
        %726 = vmatprep.subr.mxu0 0.0
        %727 = vmatpush1.msra.mxu0 0.0
        %728 = vmatprep.subr.mxu0 0.0
        %729 = vmatpush1.msra.mxu0 0.0
        %730 = vmatprep.subr.mxu0 0.0
        %731 = vmatpush1.msra.mxu0 0.0
        %732 = vmatprep.subr.mxu0 0.0
        %733 = vmatpush1.msra.mxu0 0.0
        %734 = vmatprep.subr.mxu0 0.0
        %735 = vmatpush1.msra.mxu0 0.0
        %736 = vmatprep.subr.mxu0 0.0
        %737 = vmatpush1.msra.mxu0 0.0
        %738 = vmatprep.subr.mxu0 0.0
        %739 = vmatpush1.msra.mxu0 0.0
        %740 = vmatprep.subr.mxu0 0.0
        %741 = vmatpush1.msra.mxu0 0.0
        %742 = vmatprep.subr.mxu0 0.0
        %743 = vmatpush1.msra.mxu0 0.0
        %744 = vmatprep.subr.mxu0 0.0
        %745 = vmatpush1.msra.mxu0 0.0
        %746 = vmatprep.subr.mxu0 0.0
        %747 = vmatpush1.msra.mxu0 %v714
        %748 = vmatprep.subr.mxu0 0.0
        %749 = vmatpush2.msra.mxu0 0.0
        %750 = vmatprep.subr.mxu0 0.0
        %751 = vmatpush2.msra.mxu0 0.0
        %752 = vmatprep.subr.mxu0 0.0
        %753 = vmatpush2.msra.mxu0 0.0
        %754 = vmatprep.subr.mxu0 0.0
        %755 = vmatpush2.msra.mxu0 0.0
        %756 = vmatprep.subr.mxu0 0.0
        %757 = vmatpush2.msra.mxu0 0.0
        %758 = vmatprep.subr.mxu0 0.0
        %759 = vmatpush2.msra.mxu0 0.0
        %760 = vmatprep.subr.mxu0 0.0
        %761 = vmatpush2.msra.mxu0 0.0
        %762 = vmatprep.subr.mxu0 0.0
        %763 = vmatpush2.msra.mxu0 0.0
        %764 = vmatprep.subr.mxu0 0.0
        %765 = vmatpush2.msra.mxu0 0.0
        %766 = vmatprep.subr.mxu0 0.0
        %767 = vmatpush2.msra.mxu0 0.0
        %768 = vmatprep.subr.mxu0 0.0
        %769 = vmatpush2.msra.mxu0 0.0
        %770 = vmatprep.subr.mxu0 0.0
        %771 = vmatpush2.msra.mxu0 0.0
        %772 = vmatprep.subr.mxu0 0.0
        %773 = vmatpush2.msra.mxu0 0.0
        %774 = vmatprep.subr.mxu0 0.0
        %775 = vmatpush2.msra.mxu0 0.0
        %776 = vmatprep.subr.mxu0 0.0
        %777 = vmatpush2.msra.mxu0 0.0
        %778 = vmatprep.subr.mxu0 0.0
        %779 = vmatpush2.msra.mxu0 0.0
        %780 = vmatprep.mubr.f32.mxu0 0.0
        %781 = vmatmul.mubr.f32.gmra.mxu0 %v712
        %v782 = vpop.f32.mrf.mxu0
        %v783 = vadd.f32 0.0, %v782
        %v784 = vpop.f32.mrf.mxu0
        %785 = vdwg.mxu0
        %v786 = vsub.f32 %v555, %v783
        %v788 = vsel %vm558, %v368, 0
        %790 = vmatprep.subr.mxu0 0.0
        %791 = vmatpush1.msra.mxu0 0.0
        %792 = vmatprep.subr.mxu0 0.0
        %793 = vmatpush1.msra.mxu0 0.0
        %794 = vmatprep.subr.mxu0 0.0
        %795 = vmatpush1.msra.mxu0 0.0
        %796 = vmatprep.subr.mxu0 0.0
        %797 = vmatpush1.msra.mxu0 0.0
        %798 = vmatprep.subr.mxu0 0.0
        %799 = vmatpush1.msra.mxu0 0.0
        %800 = vmatprep.subr.mxu0 0.0
        %801 = vmatpush1.msra.mxu0 0.0
        %802 = vmatprep.subr.mxu0 0.0
        %803 = vmatpush1.msra.mxu0 0.0
        %804 = vmatprep.subr.mxu0 0.0
        %805 = vmatpush1.msra.mxu0 0.0
        %806 = vmatprep.subr.mxu0 0.0
        %807 = vmatpush1.msra.mxu0 0.0
        %808 = vmatprep.subr.mxu0 0.0
        %809 = vmatpush1.msra.mxu0 0.0
        %810 = vmatprep.subr.mxu0 0.0
        %811 = vmatpush1.msra.mxu0 0.0
        %812 = vmatprep.subr.mxu0 0.0
        %813 = vmatpush1.msra.mxu0 0.0
        %814 = vmatprep.subr.mxu0 0.0
        %815 = vmatpush1.msra.mxu0 0.0
        %816 = vmatprep.subr.mxu0 0.0
        %817 = vmatpush1.msra.mxu0 0.0
        %818 = vmatprep.subr.mxu0 0.0
        %819 = vmatpush1.msra.mxu0 0.0
        %820 = vmatprep.subr.mxu0 0.0
        %821 = vmatpush1.msra.mxu0 %v714
        %822 = vmatprep.subr.mxu0 0.0
        %823 = vmatpush2.msra.mxu0 0.0
        %824 = vmatprep.subr.mxu0 0.0
        %825 = vmatpush2.msra.mxu0 0.0
        %826 = vmatprep.subr.mxu0 0.0
        %827 = vmatpush2.msra.mxu0 0.0
        %828 = vmatprep.subr.mxu0 0.0
        %829 = vmatpush2.msra.mxu0 0.0
        %830 = vmatprep.subr.mxu0 0.0
        %831 = vmatpush2.msra.mxu0 0.0
        %832 = vmatprep.subr.mxu0 0.0
        %833 = vmatpush2.msra.mxu0 0.0
        %834 = vmatprep.subr.mxu0 0.0
        %835 = vmatpush2.msra.mxu0 0.0
        %836 = vmatprep.subr.mxu0 0.0
        %837 = vmatpush2.msra.mxu0 0.0
        %838 = vmatprep.subr.mxu0 0.0
        %839 = vmatpush2.msra.mxu0 0.0
        %840 = vmatprep.subr.mxu0 0.0
        %841 = vmatpush2.msra.mxu0 0.0
        %842 = vmatprep.subr.mxu0 0.0
        %843 = vmatpush2.msra.mxu0 0.0
        %844 = vmatprep.subr.mxu0 0.0
        %845 = vmatpush2.msra.mxu0 0.0
        %846 = vmatprep.subr.mxu0 0.0
        %847 = vmatpush2.msra.mxu0 0.0
        %848 = vmatprep.subr.mxu0 0.0
        %849 = vmatpush2.msra.mxu0 0.0
        %850 = vmatprep.subr.mxu0 0.0
        %851 = vmatpush2.msra.mxu0 0.0
        %852 = vmatprep.subr.mxu0 0.0
        %853 = vmatpush2.msra.mxu0 0.0
        %854 = vmatprep.mubr.f32.mxu0 0.0
        %855 = vmatmul.mubr.f32.gmra.mxu0 %v788
        %v856 = vpop.f32.mrf.mxu0
        %v857 = vadd.f32 0.0, %v856
        %v858 = vpop.f32.mrf.mxu0
        %859 = vdwg.mxu0
        %v860 = vsub.f32 %v555, %v857
        %v861 = vmul.f32 %v636, %v636
        %v862 = vmul.f32 %v710, %v710
        %v863 = vadd.f32 %v861, %v862
        %v864 = vmul.f32 %v786, %v786
        %v865 = vadd.f32 %v863, %v864
        %v866 = vmul.f32 %v860, %v860
        %v867 = vadd.f32 %v865, %v866
        %vm868 = vcmask 27648
        %869 = vst.msk [vmem:[%s363] sm:$0xf] %vm868, %v867
        %s870 = sand.u32 %s214, 1
        %s871 = scalar_lea.sflag [#allocation4], %s870
        %s872 = sand.u32 %s214, 1
        %s873 = smul.addr %s872, 4
        %s874 = scalar_lea.vmem [#allocation7], %s873
        // Predicated region
        $region61: #{tpu_custom_call.1} parent=51 // pred_check
          %p875 = pneg %p224
        $region62: #{tpu_custom_call.1} parent=51 // pred_check_branch
          %877 = sbr.rel (%p875) target = $region64
        $region63: #{tpu_custom_call.1} parent=51 // pred_region
          %s879 = ssub.s32 64, 64
          %880 = vsyncadd %s871, %s879
          %s881 = smul.addr %s28, 64
          %s882 = scalar_lea.hbm %s8, %s881
          %s884 = sshll.u32 %s874, 4
          %s885 = int_to_ptr.vmem [resolvable:$true] %s884
          %887 = dma.vmem_to_hbm [thread:$0]  %s885, 64, %s882, %s871
        $region64: #{tpu_custom_call.1} parent=51 // pred_fallthru
          _
      $region52: #{tpu_custom_call.1} parent=5 // pred_fallthru
        _
      %p888 = scmp.le.s32.totalorder 2, %s23
      // Predicated region
      $region65: #{tpu_custom_call.1} parent=5 // pred_check
        %p889 = pneg %p888
      $region66: #{tpu_custom_call.1} parent=5 // pred_check_branch
        %891 = sbr.rel (%p889) target = $region68
      $region67: #{tpu_custom_call.1} parent=5 // pred_region
        %s892 = ssub.s32 %s23, 2
        // Predicated region
        $region69: #{tpu_custom_call.1} parent=67 // pred_check
          %p893 = pneg %p230
        $region70: #{tpu_custom_call.1} parent=67 // pred_check_branch
          %895 = sbr.rel (%p893) target = $region72
        $region71: #{tpu_custom_call.1} parent=67 // pred_region
          %s896 = sand.u32 %s215, 1
          %s897 = scalar_lea.sflag [#allocation4], %s896
          %s898 = sand.u32 %s215, 1
          %s899 = smul.addr %s898, 4
          %s900 = scalar_lea.vmem [#allocation7], %s899
          %901 = dma.done %s897, 64
        $region72: #{tpu_custom_call.1} parent=67 // pred_fallthru
          _
      $region68: #{tpu_custom_call.1} parent=5 // pred_fallthru
        _
    $region6: #{tpu_custom_call.1} parent=1 // loop_footer
      %s27 = sadd.s32 1, %s23
    $region7: #{tpu_custom_call.1} parent=1 // loop_footer_branch
      %22 = sbr.rel target = $region3
    $region8: #{tpu_custom_call.1} parent=1 // loop_exit
      _
    %902 = vsyncpa [#allocation3], 1
    %s903 = scalar_lea.sflag [#allocation3], 1
    %904 = vsyncpa %s903, 1
    %905 = vsyncpa [#allocation6], 1
    %s906 = scalar_lea.sflag [#allocation6], 1
    %907 = vsyncpa %s906, 1
    %908 = vsyncpa [#allocation4], 1
    %s909 = scalar_lea.sflag [#allocation4], 1
    %910 = vsyncpa %s909, 1

</llo_original>
